<compile_context>
chip_gen: v5e
topology: v5e:2x2
jax: 0.10.0
libtpu: 0.0.40
codegen_flags: <defaults>
</compile_context>

<pallas_src>
import functools

import jax
import jax.numpy as jnp
from jax.experimental import pallas as pl
from jax.experimental.pallas import tpu as pltpu

NUM_CLASSES = 15          # foreground classes; index NUM_CLASSES == background
ANCHOR_VAL = 5.0
ANCHOR_WEIGHT = 0.1
LOSS_WEIGHT = 1.0
_LANE = 128               # TPU lane width


def _make_anchors(num_classes: int, val: float = ANCHOR_VAL) -> jnp.ndarray:
    """set_anchors(): diag(+val), off-diag(-val), shape (C, C), C = num_classes+1."""
    c = num_classes + 1
    eye = jnp.eye(c, dtype=jnp.float32) * val
    return jnp.where(eye != 0, eye, jnp.float32(-val))


def _loss_kernel(x_ref, lbl_ref, out_ref, ce_acc, la_acc, m_acc, *, n_total, tn):
    # layout: x_ref   (TN, C)  — native logits tile (transposed to (C, TN) below)
    #         lbl_ref (1, TN)  int32 labels (garbage in the partial-block tail)
    #         out_ref (1, 1)   f32 scalar loss (written on last grid step)
    #         ce_acc/la_acc/m_acc: (1, TN) f32 VMEM lane-vector running sums
    pid = pl.program_id(0)

    @pl.when(pid == 0)
    def _():
        ce_acc[...] = jnp.zeros_like(ce_acc)
        la_acc[...] = jnp.zeros_like(la_acc)
        m_acc[...] = jnp.zeros_like(m_acc)

    # classes on sublanes, samples lane-dense
    x = jnp.transpose(x_ref[...].astype(jnp.float32))          # (C, TN)
    lbl = lbl_ref[...]                                          # (1, TN) int32
    c = x.shape[0]

    # iota-based validity mask: no HBM padding pass in the wrapper.
    col = pid * tn + jax.lax.broadcasted_iota(jnp.int32, lbl.shape, 1)  # (1, TN)
    valid_b = col < n_total                                     # (1, TN) bool
    valid = valid_b.astype(jnp.float32)
    x = jnp.where(valid_b, x, 0.0)                              # clamp garbage tail

    row = jax.lax.broadcasted_iota(jnp.int32, x.shape, 0)       # class idx / sublane
    onehot = (row == lbl).astype(jnp.float32)                   # (C, TN)

    # --- F.cross_entropy(logits, label, reduction='none') per sample ---
    m = jnp.max(x, axis=0, keepdims=True)                       # (1, TN)
    lse = jnp.log(jnp.sum(jnp.exp(x - m), axis=0, keepdims=True)) + m
    x_at_label = jnp.sum(x * onehot, axis=0, keepdims=True)     # (1, TN)
    ce = (lse - x_at_label) * valid                             # (1, TN)

    # --- anchor term: ||x_i - anchors[label_i]||_2, foreground only ---
    # closed form for +/-5 anchors: d^2 = sum(x^2) - 20*x_lbl + 10*sum(x) + 25*C
    sum_x = jnp.sum(x, axis=0, keepdims=True)                   # (1, TN)
    sum_x2 = jnp.sum(x * x, axis=0, keepdims=True)              # (1, TN)
    d2 = (sum_x2
          - (4.0 * ANCHOR_VAL) * x_at_label
          + (2.0 * ANCHOR_VAL) * sum_x
          + (ANCHOR_VAL * ANCHOR_VAL) * c)
    d_label = jnp.sqrt(jnp.maximum(d2, 0.0))                    # (1, TN)
    fg = valid * (lbl != (c - 1)).astype(jnp.float32)           # (1, TN)

    ce_acc[...] += ce
    la_acc[...] += d_label * fg
    m_acc[...] += fg

    @pl.when(pid == pl.num_programs(0) - 1)
    def _():
        ce_sum = jnp.sum(ce_acc[...], axis=1, keepdims=True)    # (1, 1)
        la_sum = jnp.sum(la_acc[...], axis=1, keepdims=True)    # (1, 1)
        m_sum = jnp.sum(m_acc[...], axis=1, keepdims=True)      # (1, 1)
        loss_ce = ce_sum * (1.0 / n_total)                      # global-N mean
        loss_a = jnp.where(m_sum > 0, la_sum / jnp.maximum(m_sum, 1.0), 0.0)
        out_ref[...] = LOSS_WEIGHT * (loss_ce + ANCHOR_WEIGHT * loss_a)


def anchor_ce_loss(cls_score: jnp.ndarray, label: jnp.ndarray,
                   *, max_tile: int = 16384) -> jnp.ndarray:
    """cls_score: (N, num_classes+1) float (f32/bf16); label: (N,) int in [0, num_classes].
    Returns scalar loss (reduction='mean', no sample/class weights)."""
    n, c = cls_score.shape
    assert max_tile % _LANE == 0

    lbl = label.astype(jnp.int32).reshape(1, n)        # free metadata reshape

    # lane tile: multiple of 128, capped at max_tile; last block may be partial
    n_rounded = pl.cdiv(n, _LANE) * _LANE
    tn = min(max_tile, n_rounded)
    num_tiles = pl.cdiv(n, tn)

    kernel = functools.partial(_loss_kernel, n_total=n, tn=tn)
    out = pl.pallas_call(
        kernel,
        out_shape=jax.ShapeDtypeStruct((1, 1), jnp.float32),
        grid_spec=pltpu.PrefetchScalarGridSpec(
            num_scalar_prefetch=0,
            grid=(num_tiles,),
            in_specs=[
                pl.BlockSpec((tn, c), lambda i: (i, 0)),   # logits, native (TN, C)
                pl.BlockSpec((1, tn), lambda i: (0, i)),   # labels, (1, TN)
            ],
            out_specs=pl.BlockSpec((1, 1), lambda i: (0, 0)),
            scratch_shapes=[pltpu.VMEM((1, tn), jnp.float32)] * 3,
        ),
        compiler_params=pltpu.CompilerParams(
            dimension_semantics=("arbitrary",)),
    )(cls_score, lbl)
    return out[0, 0]


def _reference(cls_score, label):
    """Pure-JAX reference of the PyTorch forward (defaults)."""
    c = cls_score.shape[1]
    anchors = _make_anchors(c - 1)
    x = cls_score.astype(jnp.float32)
    logp = jax.nn.log_softmax(x, axis=1)
    ce = -jnp.take_along_axis(logp, label[:, None], axis=1)[:, 0]
    loss_ce = jnp.mean(ce)
    mask = (label != (c - 1)).astype(jnp.float32)
    dists = jnp.linalg.norm(x[:, None, :] - anchors[None, :, :], axis=2)
    d_label = jnp.take_along_axis(dists, label[:, None], axis=1)[:, 0]
    msum = jnp.sum(mask)
    loss_a = jnp.where(msum > 0, jnp.sum(d_label * mask) / jnp.maximum(msum, 1.0), 0.0)
    return LOSS_WEIGHT * (loss_ce + ANCHOR_WEIGHT * loss_a)


if __name__ == "__main__":
    key = jax.random.PRNGKey(0)
    C = NUM_CLASSES + 1

    # case 1: small batch, single (partial) tile
    k1, k2, k3, k4 = jax.random.split(key, 4)
    N1 = 8
    x1 = jax.random.normal(k1, (N1, C), dtype=jnp.float32)
    y1 = jax.random.randint(k2, (N1,), 0, NUM_CLASSES + 1, dtype=jnp.int32)
    loss1 = anchor_ce_loss(x1, y1)
    jax.block_until_ready(loss1)
    assert jnp.allclose(loss1, _reference(x1, y1), rtol=1e-4, atol=1e-5), loss1

    # case 2: multi-tile grid with a partial last block (N=300, tile=128 -> 3 tiles)
    N2 = 300
    x2 = jax.random.normal(k3, (N2, C), dtype=jnp.float32)
    y2 = jax.random.randint(k4, (N2,), 0, NUM_CLASSES + 1, dtype=jnp.int32)
    loss2 = anchor_ce_loss(x2, y2, max_tile=128)
    jax.block_until_ready(loss2)
    assert jnp.allclose(loss2, _reference(x2, y2), rtol=1e-4, atol=1e-5), loss2

    # case 3: all-background labels (anchor term = 0 guard)
    y3 = jnp.full((N1,), NUM_CLASSES, dtype=jnp.int32)
    loss3 = anchor_ce_loss(x1, y3)
    jax.block_until_ready(loss3)
    assert jnp.allclose(loss3, _reference(x1, y3), rtol=1e-4, atol=1e-5), loss3

    # case 4: bf16 logits, default tile (single partial block), in-kernel f32 cast
    x4 = x2.astype(jnp.bfloat16)
    loss4 = anchor_ce_loss(x4, y2)
    jax.block_until_ready(loss4)
    assert jnp.allclose(loss4, _reference(x4, y2), rtol=1e-4, atol=1e-4), loss4

    print("KERNEL_OK")
</pallas_src>

<mosaic_0001>
module attributes {stable_mosaic.version = 11 : i64} {
  func.func @_loss_kernel(%arg0: i32, %arg1: memref<128x16xf32, #tpu.memory_space<vmem>>, %arg2: memref<1x128xi32, #tpu.memory_space<vmem>>, %arg3: memref<1x1xf32, #tpu.memory_space<vmem>>, %arg4: memref<1x128xf32, #tpu.memory_space<vmem>>, %arg5: memref<1x128xf32, #tpu.memory_space<vmem>>, %arg6: memref<1x128xf32, #tpu.memory_space<vmem>>) attributes {dimension_semantics = [#tpu.dimension_semantics<arbitrary>], iteration_bounds = array<i64: 1>, scalar_prefetch = 0 : i64, scratch_operands = 3 : i64, tpu.core_type = #tpu.core_type<tc>, window_params = [{transform_indices = @transform_0, window_bounds = array<i64: 128, 16>}, {transform_indices = @transform_1, window_bounds = array<i64: 1, 128>}, {pipeline_mode = #tpu.pipeline_mode<synchronous>, transform_indices = @transform_2, window_bounds = array<i64: 1, 1>}]} {
    %c0_i32 = arith.constant 0 : i32
    %0 = arith.cmpi eq, %arg0, %c0_i32 : i32
    %1 = arith.extui %0 : i1 to i32
    %c0_i32_0 = arith.constant 0 : i32
    %2 = arith.cmpi ne, %1, %c0_i32_0 : i32
    scf.if %2 {
      %cst_27 = arith.constant 0.000000e+00 : f32
      %71 = vector.broadcast %cst_27 : f32 to vector<1x128xf32>
      %c0_28 = arith.constant 0 : index
      %c0_29 = arith.constant 0 : index
      %72 = vector.load %arg4[%c0_28, %c0_29] : memref<1x128xf32, #tpu.memory_space<vmem>>, vector<1x128xf32>
      tpu.vector_store %arg4[%c0_28, %c0_29], %71 {strides = array<i32>} : memref<1x128xf32, #tpu.memory_space<vmem>>, vector<1x128xf32>,
      %cst_30 = arith.constant 0.000000e+00 : f32
      %73 = vector.broadcast %cst_30 : f32 to vector<1x128xf32>
      %c0_31 = arith.constant 0 : index
      %c0_32 = arith.constant 0 : index
      %74 = vector.load %arg5[%c0_31, %c0_32] : memref<1x128xf32, #tpu.memory_space<vmem>>, vector<1x128xf32>
      tpu.vector_store %arg5[%c0_31, %c0_32], %73 {strides = array<i32>} : memref<1x128xf32, #tpu.memory_space<vmem>>, vector<1x128xf32>,
      %cst_33 = arith.constant 0.000000e+00 : f32
      %75 = vector.broadcast %cst_33 : f32 to vector<1x128xf32>
      %c0_34 = arith.constant 0 : index
      %c0_35 = arith.constant 0 : index
      %76 = vector.load %arg6[%c0_34, %c0_35] : memref<1x128xf32, #tpu.memory_space<vmem>>, vector<1x128xf32>
      tpu.vector_store %arg6[%c0_34, %c0_35], %75 {strides = array<i32>} : memref<1x128xf32, #tpu.memory_space<vmem>>, vector<1x128xf32>,
    } else {
    }
    %c0 = arith.constant 0 : index
    %c0_1 = arith.constant 0 : index
    %3 = vector.load %arg1[%c0, %c0_1] : memref<128x16xf32, #tpu.memory_space<vmem>>, vector<128x16xf32>
    %4 = tpu.transpose %3, [1, 0] : vector<128x16xf32> -> vector<16x128xf32>
    %c0_2 = arith.constant 0 : index
    %c0_3 = arith.constant 0 : index
    %5 = vector.load %arg2[%c0_2, %c0_3] : memref<1x128xi32, #tpu.memory_space<vmem>>, vector<1x128xi32>
    %c128_i32 = arith.constant 128 : i32
    %6 = arith.muli %arg0, %c128_i32 : i32
    %7 = tpu.iota {dimensions = array<i32: 1>} : vector<1x128xi32>
    %8 = vector.broadcast %6 : i32 to vector<1x128xi32>
    %9 = arith.addi %8, %7 : vector<1x128xi32>
    %c8_i32 = arith.constant 8 : i32
    %10 = vector.broadcast %c8_i32 : i32 to vector<1x128xi32>
    %11 = arith.cmpi slt, %9, %10 : vector<1x128xi32>
    %12 = arith.extui %11 : vector<1x128xi1> to vector<1x128xi32>
    %13 = arith.sitofp %12 : vector<1x128xi32> to vector<1x128xf32>
    %cst = arith.constant 0.000000e+00 : f32
    %14 = vector.shape_cast %11 : vector<1x128xi1> to vector<1x128xi1>
    %15 = vector.broadcast %14 : vector<1x128xi1> to vector<16x128xi1>
    %16 = vector.broadcast %cst : f32 to vector<16x128xf32>
    %17 = arith.select %15, %4, %16 : vector<16x128xi1>, vector<16x128xf32>
    %18 = tpu.iota {dimensions = array<i32: 0>} : vector<16x128xi32>
    %19 = vector.broadcast %5 : vector<1x128xi32> to vector<16x128xi32>
    %20 = arith.cmpi eq, %18, %19 : vector<16x128xi32>
    %21 = arith.extui %20 : vector<16x128xi1> to vector<16x128xi32>
    %22 = arith.sitofp %21 : vector<16x128xi32> to vector<16x128xf32>
    %cst_4 = arith.constant dense<0xFF800000> : vector<128xf32>
    %23 = vector.multi_reduction <maximumf>, %17, %cst_4 [0] : vector<16x128xf32> to vector<128xf32>
    %24 = vector.shape_cast %23 : vector<128xf32> to vector<1x128xf32>
    %25 = vector.broadcast %24 : vector<1x128xf32> to vector<16x128xf32>
    %26 = arith.subf %17, %25 : vector<16x128xf32>
    %27 = math.exp %26 : vector<16x128xf32>
    %cst_5 = arith.constant dense<0.000000e+00> : vector<128xf32>
    %28 = vector.multi_reduction <add>, %27, %cst_5 [0] : vector<16x128xf32> to vector<128xf32>
    %29 = vector.shape_cast %28 : vector<128xf32> to vector<1x128xf32>
    %30 = math.log %29 : vector<1x128xf32>
    %31 = arith.addf %30, %24 : vector<1x128xf32>
    %32 = arith.mulf %17, %22 : vector<16x128xf32>
    %cst_6 = arith.constant dense<0.000000e+00> : vector<128xf32>
    %33 = vector.multi_reduction <add>, %32, %cst_6 [0] : vector<16x128xf32> to vector<128xf32>
    %34 = vector.shape_cast %33 : vector<128xf32> to vector<1x128xf32>
    %35 = arith.subf %31, %34 : vector<1x128xf32>
    %36 = arith.mulf %35, %13 : vector<1x128xf32>
    %cst_7 = arith.constant dense<0.000000e+00> : vector<128xf32>
    %37 = vector.multi_reduction <add>, %17, %cst_7 [0] : vector<16x128xf32> to vector<128xf32>
    %38 = vector.shape_cast %37 : vector<128xf32> to vector<1x128xf32>
    %39 = arith.mulf %17, %17 : vector<16x128xf32>
    %cst_8 = arith.constant dense<0.000000e+00> : vector<128xf32>
    %40 = vector.multi_reduction <add>, %39, %cst_8 [0] : vector<16x128xf32> to vector<128xf32>
    %41 = vector.shape_cast %40 : vector<128xf32> to vector<1x128xf32>
    %cst_9 = arith.constant 2.000000e+01 : f32
    %42 = vector.broadcast %cst_9 : f32 to vector<1x128xf32>
    %43 = arith.mulf %42, %34 : vector<1x128xf32>
    %44 = arith.subf %41, %43 : vector<1x128xf32>
    %cst_10 = arith.constant 1.000000e+01 : f32
    %45 = vector.broadcast %cst_10 : f32 to vector<1x128xf32>
    %46 = arith.mulf %45, %38 : vector<1x128xf32>
    %47 = arith.addf %44, %46 : vector<1x128xf32>
    %cst_11 = arith.constant 4.000000e+02 : f32
    %48 = vector.broadcast %cst_11 : f32 to vector<1x128xf32>
    %49 = arith.addf %47, %48 : vector<1x128xf32>
    %cst_12 = arith.constant 0.000000e+00 : f32
    %50 = vector.broadcast %cst_12 : f32 to vector<1x128xf32>
    %51 = arith.maximumf %49, %50 : vector<1x128xf32>
    %52 = math.sqrt %51 : vector<1x128xf32>
    %c15_i32 = arith.constant 15 : i32
    %53 = vector.broadcast %c15_i32 : i32 to vector<1x128xi32>
    %54 = arith.cmpi ne, %5, %53 : vector<1x128xi32>
    %55 = arith.extui %54 : vector<1x128xi1> to vector<1x128xi32>
    %56 = arith.sitofp %55 : vector<1x128xi32> to vector<1x128xf32>
    %57 = arith.mulf %13, %56 : vector<1x128xf32>
    %c0_13 = arith.constant 0 : index
    %c0_14 = arith.constant 0 : index
    %58 = vector.load %arg4[%c0_13, %c0_14] : memref<1x128xf32, #tpu.memory_space<vmem>>, vector<1x128xf32>
    %59 = arith.addf %58, %36 : vector<1x128xf32>
    %c0_15 = arith.constant 0 : index
    %c0_16 = arith.constant 0 : index
    %60 = vector.load %arg4[%c0_15, %c0_16] : memref<1x128xf32, #tpu.memory_space<vmem>>, vector<1x128xf32>
    tpu.vector_store %arg4[%c0_15, %c0_16], %59 {strides = array<i32>} : memref<1x128xf32, #tpu.memory_space<vmem>>, vector<1x128xf32>,
    %c0_17 = arith.constant 0 : index
    %c0_18 = arith.constant 0 : index
    %61 = vector.load %arg5[%c0_17, %c0_18] : memref<1x128xf32, #tpu.memory_space<vmem>>, vector<1x128xf32>
    %62 = arith.mulf %52, %57 : vector<1x128xf32>
    %63 = arith.addf %61, %62 : vector<1x128xf32>
    %c0_19 = arith.constant 0 : index
    %c0_20 = arith.constant 0 : index
    %64 = vector.load %arg5[%c0_19, %c0_20] : memref<1x128xf32, #tpu.memory_space<vmem>>, vector<1x128xf32>
    tpu.vector_store %arg5[%c0_19, %c0_20], %63 {strides = array<i32>} : memref<1x128xf32, #tpu.memory_space<vmem>>, vector<1x128xf32>,
    %c0_21 = arith.constant 0 : index
    %c0_22 = arith.constant 0 : index
    %65 = vector.load %arg6[%c0_21, %c0_22] : memref<1x128xf32, #tpu.memory_space<vmem>>, vector<1x128xf32>
    %66 = arith.addf %65, %57 : vector<1x128xf32>
    %c0_23 = arith.constant 0 : index
    %c0_24 = arith.constant 0 : index
    %67 = vector.load %arg6[%c0_23, %c0_24] : memref<1x128xf32, #tpu.memory_space<vmem>>, vector<1x128xf32>
    tpu.vector_store %arg6[%c0_23, %c0_24], %66 {strides = array<i32>} : memref<1x128xf32, #tpu.memory_space<vmem>>, vector<1x128xf32>,
    %c0_i32_25 = arith.constant 0 : i32
    %68 = arith.cmpi eq, %arg0, %c0_i32_25 : i32
    %69 = arith.extui %68 : i1 to i32
    %c0_i32_26 = arith.constant 0 : i32
    %70 = arith.cmpi ne, %69, %c0_i32_26 : i32
    scf.if %70 {
      %c0_27 = arith.constant 0 : index
      %c0_28 = arith.constant 0 : index
      %71 = vector.load %arg4[%c0_27, %c0_28] : memref<1x128xf32, #tpu.memory_space<vmem>>, vector<1x128xf32>
      %cst_29 = arith.constant dense<0.000000e+00> : vector<1xf32>
      %72 = vector.multi_reduction <add>, %71, %cst_29 [1] : vector<1x128xf32> to vector<1xf32>
      %73 = vector.shape_cast %72 : vector<1xf32> to vector<1x1xf32>
      %c0_30 = arith.constant 0 : index
      %c0_31 = arith.constant 0 : index
      %74 = vector.load %arg5[%c0_30, %c0_31] : memref<1x128xf32, #tpu.memory_space<vmem>>, vector<1x128xf32>
      %cst_32 = arith.constant dense<0.000000e+00> : vector<1xf32>
      %75 = vector.multi_reduction <add>, %74, %cst_32 [1] : vector<1x128xf32> to vector<1xf32>
      %76 = vector.shape_cast %75 : vector<1xf32> to vector<1x1xf32>
      %c0_33 = arith.constant 0 : index
      %c0_34 = arith.constant 0 : index
      %77 = vector.load %arg6[%c0_33, %c0_34] : memref<1x128xf32, #tpu.memory_space<vmem>>, vector<1x128xf32>
      %cst_35 = arith.constant dense<0.000000e+00> : vector<1xf32>
      %78 = vector.multi_reduction <add>, %77, %cst_35 [1] : vector<1x128xf32> to vector<1xf32>
      %79 = vector.shape_cast %78 : vector<1xf32> to vector<1x1xf32>
      %cst_36 = arith.constant 1.250000e-01 : f32
      %80 = vector.broadcast %cst_36 : f32 to vector<1x1xf32>
      %81 = arith.mulf %73, %80 : vector<1x1xf32>
      %cst_37 = arith.constant 0.000000e+00 : f32
      %82 = vector.broadcast %cst_37 : f32 to vector<1x1xf32>
      %83 = arith.cmpf ogt, %79, %82 : vector<1x1xf32>
      %cst_38 = arith.constant 1.000000e+00 : f32
      %84 = vector.broadcast %cst_38 : f32 to vector<1x1xf32>
      %85 = arith.maximumf %79, %84 : vector<1x1xf32>
      %86 = arith.divf %76, %85 : vector<1x1xf32>
      %cst_39 = arith.constant 0.000000e+00 : f32
      %87 = vector.broadcast %cst_39 : f32 to vector<1x1xf32>
      %88 = arith.select %83, %86, %87 : vector<1x1xi1>, vector<1x1xf32>
      %cst_40 = arith.constant 1.000000e-01 : f32
      %89 = vector.broadcast %cst_40 : f32 to vector<1x1xf32>
      %90 = arith.mulf %89, %88 : vector<1x1xf32>
      %91 = arith.addf %81, %90 : vector<1x1xf32>
      %cst_41 = arith.constant 1.000000e+00 : f32
      %92 = vector.broadcast %cst_41 : f32 to vector<1x1xf32>
      %93 = arith.mulf %92, %91 : vector<1x1xf32>
      %c0_42 = arith.constant 0 : index
      %c0_43 = arith.constant 0 : index
      %94 = vector.load %arg3[%c0_42, %c0_43] : memref<1x1xf32, #tpu.memory_space<vmem>>, vector<1x1xf32>
      tpu.vector_store %arg3[%c0_42, %c0_43], %93 {strides = array<i32>} : memref<1x1xf32, #tpu.memory_space<vmem>>, vector<1x1xf32>,
    } else {
    }
    return
  }
  func.func @transform_0(%arg0: i32) -> (i32, i32) {
    %c0_i32 = arith.constant 0 : i32
    %c0_i32_0 = arith.constant 0 : i32
    return %arg0, %c0_i32 : i32, i32
  }
  func.func @transform_1(%arg0: i32) -> (i32, i32) {
    %c0_i32 = arith.constant 0 : i32
    %c0_i32_0 = arith.constant 0 : i32
    return %c0_i32, %arg0 : i32, i32
  }
  func.func @transform_2(%arg0: i32) -> (i32, i32) {
    %c0_i32 = arith.constant 0 : i32
    %c0_i32_0 = arith.constant 0 : i32
    %c0_i32_1 = arith.constant 0 : i32
    return %c0_i32, %c0_i32_0 : i32, i32
  }
}

</mosaic_0001>

<llo_original>
// kernel: tpu_custom_call.1
$region0: #{tpu_custom_call.1}
  #allocation0 [shape = 'u32[]', space=smem, size = 0x4, offset = 0x4, fixed_abs, tag = 'smem constant byte address 0x4 - core index']
  #allocation1 [shape = 'u32[72,128]{1,0:T(1,128)}', space=vmem, size = 0x9000, scoped, tag = 'internal scratch']
  #allocation2 [shape = 'f32[1,128]{1,0:T(1,128)}', space=vmem, size = 0x200, scoped, tag = 'scratch operand']
  #allocation3 [shape = 'f32[1,128]{1,0:T(1,128)}', space=vmem, size = 0x200, scoped, tag = 'scratch operand']
  #allocation4 [shape = 'f32[1,128]{1,0:T(1,128)}', space=vmem, size = 0x200, scoped, tag = 'scratch operand']
  %s0 = inlined_call_operand.hbm [shape: f32[8,16], index: 0, kind: input, shape index: {}]
  %s1 = inlined_call_operand.hbm [shape: s32[1,8], index: 1, kind: input, shape index: {}]
  %s2 = inlined_call_operand.hbm [shape: f32[1,1], index: 2, kind: output, shape index: {}]
  %s3 = sld [smem:[#allocation0]]
  $region34: #{tpu_custom_call.1} parent=0
    _
  %s5 = ssub.s32 1, %s3
  %s6 = scalar_select 0, %s5, %s3
  $region1: #{tpu_custom_call.1} parent=0
    #allocation5 [shape = 'u8[65536]{0}', space=vmem, size = 0x10000, scoped, tag = 'input window, operand 0, single buffered']
    #allocation6 [shape = 's32[1]{0}', space=sflag, size = 0x4, scoped, tag = 'scoped memory for tpu_custom_call.1']
    #allocation7 [shape = 's32[1]{0}', space=sflag, size = 0x4, scoped, tag = 'scoped memory for tpu_custom_call.1']
    #allocation8 [shape = 'u8[512]{0}', space=vmem, size = 0x400, scoped, tag = 'input window, operand 1, single buffered']
    #allocation9 [shape = 's32[1]{0}', space=sflag, size = 0x4, scoped, tag = 'scoped memory for tpu_custom_call.1']
    #allocation10 [shape = 'u8[512]{0}', space=vmem, size = 0x400, scoped, tag = 'output window, operand 0, single buffered']
    %7 = vsyncpa [#allocation6], 0
    %8 = vsyncpa [#allocation9], 0
    %9 = vsyncpa [#allocation7], 0
    // Predicated region
    $region2: #{tpu_custom_call.1} parent=1 // pred_check
      _
    $region3: #{tpu_custom_call.1} parent=1 // pred_check_branch
      %11 = sbr.rel (0) target = $region5
    $region4: #{tpu_custom_call.1} parent=1 // pred_region
      %13 = vsyncadd [#allocation6], 1920
      %s14 = sshll.u32 %s0, 4
      %s15 = int_to_ptr.hbm [resolvable:$true] %s14
      %s16 = sshll.u32 [#allocation5], 4
      %s17 = int_to_ptr.vmem [resolvable:$true] %s16
      %22 = dma.hbm_to_vmem [thread:$0]  %s15, 128, %s17, [#allocation6], 128, 128, 8
    $region5: #{tpu_custom_call.1} parent=1 // pred_fallthru
      _
    // Predicated region
    $region6: #{tpu_custom_call.1} parent=1 // pred_check
      _
    $region7: #{tpu_custom_call.1} parent=1 // pred_check_branch
      %24 = sbr.rel (0) target = $region9
    $region8: #{tpu_custom_call.1} parent=1 // pred_region
      %26 = vsyncadd [#allocation9], 0
      %s28 = sshll.u32 %s1, 4
      %s29 = int_to_ptr.hbm [resolvable:$true] %s28
      %s30 = sshll.u32 [#allocation8], 4
      %s31 = int_to_ptr.vmem [resolvable:$true] %s30
      %33 = dma.hbm_to_vmem [thread:$0]  %s29, 16, %s31, [#allocation9]
    $region9: #{tpu_custom_call.1} parent=1 // pred_fallthru
      _
    // Predicated region
    $region10: #{tpu_custom_call.1} parent=1 // pred_check
      _
    $region11: #{tpu_custom_call.1} parent=1 // pred_check_branch
      %35 = sbr.rel (0) target = $region13
    $region12: #{tpu_custom_call.1} parent=1 // pred_region
      %37 = dma.done [#allocation6], 2048
    $region13: #{tpu_custom_call.1} parent=1 // pred_fallthru
      _
    // Predicated region
    $region14: #{tpu_custom_call.1} parent=1 // pred_check
      _
    $region15: #{tpu_custom_call.1} parent=1 // pred_check_branch
      %39 = sbr.rel (0) target = $region17
    $region16: #{tpu_custom_call.1} parent=1 // pred_region
      %41 = dma.done [#allocation9], 16
    $region17: #{tpu_custom_call.1} parent=1 // pred_fallthru
      _
    %p42 = scmp.eq.s32.totalorder 0, 0
    // Predicated region
    $region18: #{tpu_custom_call.1} parent=1 // pred_check
      %p43 = pneg %p42
    $region19: #{tpu_custom_call.1} parent=1 // pred_check_branch
      %45 = sbr.rel (%p43) target = $region21
    $region20: #{tpu_custom_call.1} parent=1 // pred_region
      %46 = vst [vmem:[#allocation2] sm:$0x1] 0.0
      %47 = vst [vmem:[#allocation3] sm:$0x1] 0.0
      %48 = vst [vmem:[#allocation4] sm:$0x1] 0.0
    $region21: #{tpu_custom_call.1} parent=1 // pred_fallthru
      _
    %v49 = vld [vmem:[#allocation5] sm:$0xff]
    %v50 = vld [vmem:[#allocation5 + $0x8] sm:$0xff]
    %v51 = vld [vmem:[#allocation5 + $0x10] sm:$0xff]
    %v52 = vld [vmem:[#allocation5 + $0x18] sm:$0xff]
    %v53 = vld [vmem:[#allocation5 + $0x20] sm:$0xff]
    %v54 = vld [vmem:[#allocation5 + $0x28] sm:$0xff]
    %v55 = vld [vmem:[#allocation5 + $0x30] sm:$0xff]
    %v56 = vld [vmem:[#allocation5 + $0x38] sm:$0xff]
    %v57 = vld [vmem:[#allocation5 + $0x40] sm:$0xff]
    %v58 = vld [vmem:[#allocation5 + $0x48] sm:$0xff]
    %v59 = vld [vmem:[#allocation5 + $0x50] sm:$0xff]
    %v60 = vld [vmem:[#allocation5 + $0x58] sm:$0xff]
    %v61 = vld [vmem:[#allocation5 + $0x60] sm:$0xff]
    %v62 = vld [vmem:[#allocation5 + $0x68] sm:$0xff]
    %v63 = vld [vmem:[#allocation5 + $0x70] sm:$0xff]
    %v64 = vld [vmem:[#allocation5 + $0x78] sm:$0xff]
    %65 = vxpose.xlu0.b32.start [1/16] %v49, 128
    %66 = vxpose.xlu0.b32.cont [2/16] %v50, 128
    %67 = vxpose.xlu0.b32.cont [3/16] %v51, 128
    %68 = vxpose.xlu0.b32.cont [4/16] %v52, 128
    %69 = vxpose.xlu0.b32.cont [5/16] %v53, 128
    %70 = vxpose.xlu0.b32.cont [6/16] %v54, 128
    %71 = vxpose.xlu0.b32.cont [7/16] %v55, 128
    %72 = vxpose.xlu0.b32.cont [8/16] %v56, 128
    %73 = vxpose.xlu0.b32.cont [9/16] %v57, 128
    %74 = vxpose.xlu0.b32.cont [10/16] %v58, 128
    %75 = vxpose.xlu0.b32.cont [11/16] %v59, 128
    %76 = vxpose.xlu0.b32.cont [12/16] %v60, 128
    %77 = vxpose.xlu0.b32.cont [13/16] %v61, 128
    %78 = vxpose.xlu0.b32.cont [14/16] %v62, 128
    %79 = vxpose.xlu0.b32.cont [15/16] %v63, 128
    %80 = vxpose.xlu0.b32.end [16/16] %v64, 128
    %v81 = vpop.trf.xlu0
    %v82 = vpop.trf.xlu0
    %v83 = vpop.trf.xlu0
    %v84 = vpop.trf.xlu0
    %v85 = vpop.trf.xlu0
    %v86 = vpop.trf.xlu0
    %v87 = vpop.trf.xlu0
    %v88 = vpop.trf.xlu0
    %v89 = vpop.trf.xlu0
    %v90 = vpop.trf.xlu0
    %v91 = vpop.trf.xlu0
    %v92 = vpop.trf.xlu0
    %v93 = vpop.trf.xlu0
    %v94 = vpop.trf.xlu0
    %v95 = vpop.trf.xlu0
    %v96 = vpop.trf.xlu0
    %v97 = vld [vmem:[#allocation8] sm:$0x1]
    %s98 = smul.u32 0, 128
    %v99 = vlaneseq
    %v100 = vand.u32 %v99, 127
    %v101 = vstv %s98
    %v102 = vadd.s32 %v101, %v100
    %vm103 = vcmp.lt.s32.totalorder %v102, 8
    %v104 = vsel %vm103, 1, 0
    %v105 = vcvt.s32.f32 %v104
    %vm106 = vcmp.eq.s32.totalorder %v104, 1
    %v107 = vsel %vm106, %v81, 0.0
    %v108 = vsel %vm106, %v82, 0.0
    %v109 = vlaneseq
    %v110 = vshrl.u32 %v109, 7
    %v111 = vadd.s32 %v110, 8
    %v112 = vperm.slane %v97, 0
    %vm113 = vcmp.eq.s32.totalorder %v110, %v112
    %vm114 = vcmp.eq.s32.totalorder %v111, %v112
    %v115 = vsel %vm113, 1, 0
    %v116 = vsel %vm114, 1, 0
    %v117 = vcvt.s32.f32 %v115
    %v118 = vcvt.s32.f32 %v116
    %v119 = vmax.f32 %v107, %v108
    %v120 = vrot.slane %v119, 4
    %v121 = vmax.f32 %v119, %v120
    %v122 = vrot.slane %v121, 2
    %v123 = vmax.f32 %v121, %v122
    %v124 = vrot.slane %v123, 1
    %v125 = vmax.f32 %v123, %v124
    %v126 = vsub.f32 %v107, %v125
    %v127 = vsub.f32 %v108, %v125
    %v128 = vmul.f32 %v126, 1.442695
    %v129 = vpow.pop %v128
    %v130 = vmul.f32 %v127, 1.442695
    %v131 = vpow.pop %v130
    %v132 = vadd.f32 %v129, %v131
    %v133 = vrot.slane %v132, 4
    %v134 = vadd.f32 %v132, %v133
    %v135 = vrot.slane %v134, 2
    %v136 = vadd.f32 %v134, %v135
    %v137 = vrot.slane %v136, 1
    %v138 = vadd.f32 %v136, %v137
    %v139 = vlog2.pop %v138
    %v140 = vmul.f32 %v139, 0.6931472
    %v141 = vadd.f32 %v140, %v125
    %v142 = vmul.f32 %v107, %v117
    %v143 = vmul.f32 %v108, %v118
    %v144 = vadd.f32 %v142, %v143
    %v145 = vrot.slane %v144, 4
    %v146 = vadd.f32 %v144, %v145
    %v147 = vrot.slane %v146, 2
    %v148 = vadd.f32 %v146, %v147
    %v149 = vrot.slane %v148, 1
    %v150 = vadd.f32 %v148, %v149
    %v151 = vsub.f32 %v141, %v150
    %v152 = vmul.f32 %v151, %v105
    %v153 = vadd.f32 %v107, %v108
    %v154 = vrot.slane %v153, 4
    %v155 = vadd.f32 %v153, %v154
    %v156 = vrot.slane %v155, 2
    %v157 = vadd.f32 %v155, %v156
    %v158 = vrot.slane %v157, 1
    %v159 = vadd.f32 %v157, %v158
    %v160 = vmul.f32 %v107, %v107
    %v161 = vmul.f32 %v108, %v108
    %v162 = vadd.f32 %v160, %v161
    %v163 = vrot.slane %v162, 4
    %v164 = vadd.f32 %v162, %v163
    %v165 = vrot.slane %v164, 2
    %v166 = vadd.f32 %v164, %v165
    %v167 = vrot.slane %v166, 1
    %v168 = vadd.f32 %v166, %v167
    %v169 = vmul.f32 %v150, 20.0
    %v170 = vsub.f32 %v168, %v169
    %v171 = vmul.f32 %v159, 10.0
    %v172 = vadd.f32 %v170, %v171
    %v173 = vadd.f32 %v172, 400.0
    %v174 = vmax.f32 %v173, 0.0
    %v175 = vrsqrt.pop %v174
    %v176 = vmul.f32 %v175, %v174
    %v177 = vmul.f32 %v176, %v175
    %v178 = vmul.f32 0.5, %v177
    %v179 = vsub.f32 1.5, %v178
    %v180 = vmul.f32 %v175, %v179
    %v181 = vmul.f32 %v174, %v180
    %vm182 = vcmp.eq.f32.partialorder %v174, inf
    %v183 = vsel %vm182, %v174, %v181
    %vm184 = vcmp.eq.f32.partialorder %v174, 0.0
    %v185 = vand.u32 %v174, 2147483648
    %v186 = vsel %vm184, %v185, %v183
    %vm187 = vcmp.ne.s32.totalorder %v97, 15
    %v188 = vsel %vm187, 1, 0
    %v189 = vcvt.s32.f32 %v188
    %v190 = vmul.f32 %v105, %v189
    %v191 = vld [vmem:[#allocation2] sm:$0x1]
    %v192 = vadd.f32 %v191, %v152
    %193 = vst [vmem:[#allocation2] sm:$0x1] %v192
    %v194 = vld [vmem:[#allocation3] sm:$0x1]
    %v195 = vmul.f32 %v186, %v190
    %v196 = vadd.f32 %v194, %v195
    %197 = vst [vmem:[#allocation3] sm:$0x1] %v196
    %v198 = vld [vmem:[#allocation4] sm:$0x1]
    %v199 = vadd.f32 %v198, %v190
    %200 = vst [vmem:[#allocation4] sm:$0x1] %v199
    // Predicated region
    $region22: #{tpu_custom_call.1} parent=1 // pred_check
      %p201 = pneg %p42
    $region23: #{tpu_custom_call.1} parent=1 // pred_check_branch
      %203 = sbr.rel (%p201) target = $region25
    $region24: #{tpu_custom_call.1} parent=1 // pred_region
      %v204 = vld [vmem:[#allocation2] sm:$0x1]
      %vm205 = vcmask 1040384
      %v206 = vsel %vm205, %v204, 0.0
      %207 = vadd.xlane.f32.xlu0 %v206
      %v208 = vpop.xlane.xlu0 %207
      %v209 = vld [vmem:[#allocation3] sm:$0x1]
      %v210 = vsel %vm205, %v209, 0.0
      %211 = vadd.xlane.f32.xlu0 %v210
      %v212 = vpop.xlane.xlu0 %211
      %v213 = vld [vmem:[#allocation4] sm:$0x1]
      %v214 = vsel %vm205, %v213, 0.0
      %215 = vadd.xlane.f32.xlu0 %v214
      %v216 = vpop.xlane.xlu0 %215
      %v217 = vmul.f32 %v208, 0.125
      %vm218 = vcmp.gt.f32.partialorder %v216, 0.0
      %v219 = vmax.f32 %v216, 1.0
      %v220 = vrcp.pop %v219
      %v221 = vmul.f32 %v219, %v220
      %v222 = vsub.f32 1.0, %v221
      %v223 = vmul.f32 %v220, %v222
      %v224 = vadd.f32 %v220, %v223
      %vm225 = vweird.f32 %v219
      %vm226 = vweird.f32 %v220
      %vm227 = vmor %vm225, %vm226
      %v228 = vsel %vm227, %v220, %v224
      %v229 = vand.u32 2147483647, %v219
      %vm230 = vcmp.eq.f32.partialorder %v229, 8.507059e+37
      %v231 = vand.u32 %v219, 2147483648
      %v232 = vor.u32 1.1754944e-38, %v231
      %v233 = vsel %vm230, %v232, %v228
      %v234 = vmul.f32 %v212, %v233
      %v235 = vsel %vm218, %v234, 0.0
      %v236 = vmul.f32 %v235, 0.1
      %v237 = vadd.f32 %v217, %v236
      %vm238 = vcmask 0
      %239 = vst.msk [vmem:[#allocation10] sm:$0x1] %vm238, %v237
    $region25: #{tpu_custom_call.1} parent=1 // pred_fallthru
      _
    // Predicated region
    $region26: #{tpu_custom_call.1} parent=1 // pred_check
      _
    $region27: #{tpu_custom_call.1} parent=1 // pred_check_branch
      %241 = sbr.rel (0) target = $region29
    $region28: #{tpu_custom_call.1} parent=1 // pred_region
      %243 = vsyncadd [#allocation7], 0
      %s245 = sshll.u32 [#allocation10], 4
      %s246 = int_to_ptr.vmem [resolvable:$true] %s245
      %s247 = sshll.u32 %s2, 4
      %s248 = int_to_ptr.hbm [resolvable:$true] %s247
      %250 = dma.vmem_to_hbm [thread:$0]  %s246, 16, %s248, [#allocation7]
    $region29: #{tpu_custom_call.1} parent=1 // pred_fallthru
      _
    // Predicated region
    $region30: #{tpu_custom_call.1} parent=1 // pred_check
      _
    $region31: #{tpu_custom_call.1} parent=1 // pred_check_branch
      %252 = sbr.rel (0) target = $region33
    $region32: #{tpu_custom_call.1} parent=1 // pred_region
      %254 = dma.done [#allocation7], 16
    $region33: #{tpu_custom_call.1} parent=1 // pred_fallthru
      _
    %255 = vsyncpa [#allocation6], 1
    %256 = vsyncpa [#allocation9], 1
    %257 = vsyncpa [#allocation7], 1

</llo_original>
